<compile_context>
chip_gen: v5e
topology: v5e:2x2
jax: 0.10.0
libtpu: 0.0.40
codegen_flags: <defaults>
</compile_context>

<pallas_src>
import math

import jax
import jax.numpy as jnp
from jax.experimental import pallas as pl
from jax.experimental.pallas import tpu as pltpu

COE = 1.0
TWO_PI = 2.0 * math.pi


def _rastrigin_kernel(x_ref, y_ref, o_ref):
    # x_ref, y_ref: (1, 1) f32 VMEM tiles; o_ref: (1, 1) f32 VMEM tile.
    x = x_ref[...]
    y = y_ref[...]
    o_ref[...] = (
        x * x - COE * jnp.cos(TWO_PI * x)
        + y * y - COE * jnp.cos(TWO_PI * y)
        + 2.0 * COE
    )


def rastrigin(x, y):
    """x, y: shape (1,) float32 parameters. Returns shape (1,) float32."""
    x2 = x.reshape(1, 1).astype(jnp.float32)   # metadata-only reshape, no concat
    y2 = y.reshape(1, 1).astype(jnp.float32)
    out = pl.pallas_call(
        _rastrigin_kernel,
        out_shape=jax.ShapeDtypeStruct((1, 1), jnp.float32),
        in_specs=[
            pl.BlockSpec(memory_space=pltpu.MemorySpace.VMEM),
            pl.BlockSpec(memory_space=pltpu.MemorySpace.VMEM),
        ],
        out_specs=pl.BlockSpec(memory_space=pltpu.MemorySpace.VMEM),
    )(x2, y2)
    return out.reshape(1)


if __name__ == "__main__":
    # Deterministic "inputs": the module initializes both parameters to 5.0,
    # so the PRNG key is constructed but unused for values.
    key = jax.random.PRNGKey(0)
    del key
    X = jnp.array([5.0], dtype=jnp.float32)
    Y = jnp.array([5.0], dtype=jnp.float32)

    fn = jax.jit(rastrigin)
    result = jax.block_until_ready(fn(X, Y))

    # Reference check in plain JAX.
    ref = (
        X**2
        - COE * jnp.cos(TWO_PI * X)
        + (Y**2 - COE * jnp.cos(TWO_PI * Y))
        + 2.0 * COE
    )
    assert result.shape == (1,)
    assert result.dtype == jnp.float32
    assert jnp.allclose(result, ref, rtol=1e-5, atol=1e-5)
    print("KERNEL_OK")
</pallas_src>

<mosaic_0001>
module attributes {stable_mosaic.version = 11 : i64} {
  func.func @_rastrigin_kernel(%arg0: memref<1x1xf32, #tpu.memory_space<vmem>>, %arg1: memref<1x1xf32, #tpu.memory_space<vmem>>, %arg2: memref<1x1xf32, #tpu.memory_space<vmem>>) attributes {dimension_semantics = [], scalar_prefetch = 0 : i64, scratch_operands = 0 : i64, tpu.core_type = #tpu.core_type<tc>} {
    %c0 = arith.constant 0 : index
    %c0_0 = arith.constant 0 : index
    %0 = vector.load %arg0[%c0, %c0_0] : memref<1x1xf32, #tpu.memory_space<vmem>>, vector<1x1xf32>
    %c0_1 = arith.constant 0 : index
    %c0_2 = arith.constant 0 : index
    %1 = vector.load %arg1[%c0_1, %c0_2] : memref<1x1xf32, #tpu.memory_space<vmem>>, vector<1x1xf32>
    %2 = arith.mulf %0, %0 : vector<1x1xf32>
    %cst = arith.constant 6.28318548 : f32
    %3 = vector.broadcast %cst : f32 to vector<1x1xf32>
    %4 = arith.mulf %3, %0 : vector<1x1xf32>
    %5 = math.cos %4 : vector<1x1xf32>
    %cst_3 = arith.constant 1.000000e+00 : f32
    %6 = vector.broadcast %cst_3 : f32 to vector<1x1xf32>
    %7 = arith.mulf %6, %5 : vector<1x1xf32>
    %8 = arith.subf %2, %7 : vector<1x1xf32>
    %9 = arith.mulf %1, %1 : vector<1x1xf32>
    %10 = arith.addf %8, %9 : vector<1x1xf32>
    %cst_4 = arith.constant 6.28318548 : f32
    %11 = vector.broadcast %cst_4 : f32 to vector<1x1xf32>
    %12 = arith.mulf %11, %1 : vector<1x1xf32>
    %13 = math.cos %12 : vector<1x1xf32>
    %cst_5 = arith.constant 1.000000e+00 : f32
    %14 = vector.broadcast %cst_5 : f32 to vector<1x1xf32>
    %15 = arith.mulf %14, %13 : vector<1x1xf32>
    %16 = arith.subf %10, %15 : vector<1x1xf32>
    %cst_6 = arith.constant 2.000000e+00 : f32
    %17 = vector.broadcast %cst_6 : f32 to vector<1x1xf32>
    %18 = arith.addf %16, %17 : vector<1x1xf32>
    %c0_7 = arith.constant 0 : index
    %c0_8 = arith.constant 0 : index
    %19 = vector.load %arg2[%c0_7, %c0_8] : memref<1x1xf32, #tpu.memory_space<vmem>>, vector<1x1xf32>
    tpu.vector_store %arg2[%c0_7, %c0_8], %18 {strides = array<i32>} : memref<1x1xf32, #tpu.memory_space<vmem>>, vector<1x1xf32>,
    return
  }
}

</mosaic_0001>

<llo_original>
// kernel: rastrigin.1
$region0: #{rastrigin.1}
  #allocation0 [shape = 'u32[]', space=smem, size = 0x4, offset = 0x4, fixed_abs, tag = 'smem constant byte address 0x4 - core index']
  #allocation1 [shape = 'u32[72,128]{1,0:T(1,128)}', space=vmem, size = 0x9000, scoped, tag = 'internal scratch']
  #allocation2 [shape = 'f32[1,1]{1,0:T(1,128)S(1)}', space=vmem, size = 0x200, scoped, tag = 'scoped memory for rastrigin.1']
  #allocation3 [shape = 'f32[1,1]{1,0:T(1,128)S(1)}', space=vmem, size = 0x200, scoped, tag = 'scoped memory for rastrigin.1']
  %s0 = inlined_call_operand.<no memory space> [shape: f32[1,1], index: 0, kind: input, shape index: {}]
  %s1 = inlined_call_operand.<no memory space> [shape: f32[1,1], index: 1, kind: input, shape index: {}]
  %s2 = inlined_call_operand.hbm [shape: f32[1,1], index: 2, kind: output, shape index: {}]
  %s3 = sld [smem:[#allocation0]]
  $region18: #{rastrigin.1} parent=0
    _
  %s5 = ssub.s32 1, %s3
  %s6 = scalar_select 0, %s5, %s3
  %v7 = vstv %s0
  %8 = vst [vmem:[#allocation2] sm:$0x1] %v7
  %v9 = vstv %s1
  %10 = vst [vmem:[#allocation3] sm:$0x1] %v9
  $region1: #{rastrigin.1} parent=0
    #allocation4 [shape = 'u8[512]{0}', space=vmem, size = 0x400, scoped, tag = 'output window, operand 0, single buffered']
    #allocation5 [shape = 's32[1]{0}', space=sflag, size = 0x4, scoped, tag = 'scoped memory for rastrigin.1']
    %11 = vsyncpa [#allocation5], 0
    // Predicated region
    $region2: #{rastrigin.1} parent=1 // pred_check
      _
    $region3: #{rastrigin.1} parent=1 // pred_check_branch
      %13 = sbr.rel (0) target = $region5
    $region4: #{rastrigin.1} parent=1 // pred_region
      _
    $region5: #{rastrigin.1} parent=1 // pred_fallthru
      _
    // Predicated region
    $region6: #{rastrigin.1} parent=1 // pred_check
      _
    $region7: #{rastrigin.1} parent=1 // pred_check_branch
      %15 = sbr.rel (0) target = $region9
    $region8: #{rastrigin.1} parent=1 // pred_region
      _
    $region9: #{rastrigin.1} parent=1 // pred_fallthru
      _
    %v16 = vld [vmem:[#allocation2] sm:$0x1]
    %v17 = vld [vmem:[#allocation3] sm:$0x1]
    %v18 = vmul.f32 %v16, %v16
    %v19 = vmul.f32 %v16, 6.2831855
    %v20 = vand.u32 2147483647, %v19
    %vm21 = vcmp.le.f32.partialorder %v20, 0.7853982
    %vm22 = vcmp.lt.s32.totalorder %v19, 0
    %v23 = vand.u32 %v19, 2139095040
    %v24 = vshrl.u32 %v23, 23
    %v25 = vsub.s32 %v24, 127
    %v26 = vand.u32 2147483647, %v19
    %v27 = vand.u32 %v26, 8388607
    %v28 = vor.u32 %v27, 8388608
    %v29 = vsub.s32 0, %v28
    %v30 = vadd.s32 %v25, 1
    %vm31 = vcmp.gt.s32.totalorder %v30, 0
    %v32 = vsel %vm31, %v30, 0
    %v33 = vshrl.u32 %v32, 5
    %v34 = vand.u32 %v32, 31
    %v35 = vsub.s32 32, %v34
    %v36 = vshrl.u32 683565275, %v35
    %v37 = vshll.u32 683565275, %v34
    %v38 = vshrl.u32 2475754826, %v35
    %v39 = vor.u32 %v37, %v38
    %v40 = vshll.u32 2475754826, %v34
    %v41 = vshrl.u32 2131351028, %v35
    %v42 = vor.u32 %v40, %v41
    %v43 = vshll.u32 2131351028, %v34
    %v44 = vshrl.u32 2102212464, %v35
    %v45 = vor.u32 %v43, %v44
    %v46 = vshll.u32 2102212464, %v34
    %v47 = vshrl.u32 920167782, %v35
    %v48 = vor.u32 %v46, %v47
    %v49 = vshll.u32 920167782, %v34
    %v50 = vshrl.u32 1326507024, %v35
    %v51 = vor.u32 %v49, %v50
    %vm52 = vcmp.lt.s32.totalorder %v33, 1
    %vm53 = vcmp.lt.s32.totalorder %v33, 2
    %vm54 = vcmp.lt.s32.totalorder %v33, 3
    %vm55 = vcmp.lt.s32.totalorder %v33, 4
    %v56 = vsel %vm52, %v36, %v39
    %v57 = vsel %vm55, %v45, 2102212464
    %v58 = vsel %vm54, %v42, %v57
    %v59 = vsel %vm53, %v56, %v58
    %v60 = vsel %vm52, %v39, %v42
    %v61 = vsel %vm55, %v48, 920167782
    %v62 = vsel %vm54, %v45, %v61
    %v63 = vsel %vm53, %v60, %v62
    %v64 = vsel %vm52, %v42, %v45
    %v65 = vsel %vm55, %v51, 1326507024
    %v66 = vsel %vm54, %v48, %v65
    %v67 = vsel %vm53, %v64, %v66
    %v68 = vshll.u32 %v28, 8
    %v69 = vand.u32 %v68, 65535
    %v70 = vshrl.u32 %v68, 16
    %v71 = vand.u32 %v67, 65535
    %v72 = vshrl.u32 %v67, 16
    %v73 = vmul.u32 %v69, %v71
    %v74 = vmul.u32 %v69, %v72
    %v75 = vmul.u32 %v70, %v71
    %v76 = vmul.u32 %v70, %v72
    %v77 = vshll.u32 %v74, 16
    %v78 = vshrl.u32 %v74, 16
    %v79 = vshll.u32 %v75, 16
    %v80 = vshrl.u32 %v75, 16
    %vm81 = vc.u32 %v73, %v77
    %v82 = vsel %vm81, 1, 0
    %v83 = vadd.s32 %v73, %v77
    %v84 = vadd.s32 %v76, %v82
    %vm85 = vc.u32 %v83, %v79
    %v86 = vsel %vm85, 1, 0
    %v87 = vadd.s32 %v83, %v79
    %v88 = vadd.s32 %v84, %v86
    %v89 = vadd.s32 %v88, %v78
    %v90 = vadd.s32 %v89, %v80
    %v91 = vand.u32 %v68, 65535
    %v92 = vshrl.u32 %v68, 16
    %v93 = vand.u32 %v63, 65535
    %v94 = vshrl.u32 %v63, 16
    %v95 = vmul.u32 %v91, %v93
    %v96 = vmul.u32 %v91, %v94
    %v97 = vmul.u32 %v92, %v93
    %v98 = vmul.u32 %v92, %v94
    %v99 = vshll.u32 %v96, 16
    %v100 = vshrl.u32 %v96, 16
    %v101 = vshll.u32 %v97, 16
    %v102 = vshrl.u32 %v97, 16
    %vm103 = vc.u32 %v95, %v99
    %v104 = vsel %vm103, 1, 0
    %v105 = vadd.s32 %v95, %v99
    %v106 = vadd.s32 %v98, %v104
    %vm107 = vc.u32 %v105, %v101
    %v108 = vsel %vm107, 1, 0
    %v109 = vadd.s32 %v105, %v101
    %v110 = vadd.s32 %v106, %v108
    %v111 = vadd.s32 %v110, %v100
    %v112 = vadd.s32 %v111, %v102
    %v113 = vmul.u32 %v68, %v59
    %v114 = vadd.s32 %v90, %v109
    %vm115 = vc.u32 %v90, %v109
    %v116 = vadd.s32 %v112, 1
    %v117 = vsel %vm115, %v116, %v112
    %v118 = vadd.s32 %v113, %v117
    %v119 = vadd.s32 %v118, 536870912
    %v120 = vshrl.u32 %v119, 30
    %v121 = vshll.u32 %v120, 30
    %v122 = vsub.s32 %v118, %v121
    %vm123 = vcmp.lt.s32.totalorder %v122, 0
    %v124 = vsub.s32 0, %v122
    %v125 = vsel %vm123, %v124, %v122
    %v126 = vclz %v125
    %v127 = vsub.s32 %v126, 2
    %vm128 = vcmp.gt.s32.totalorder 0, %v127
    %v129 = vsel %vm128, 0, %v127
    %v130 = vsub.s32 32, %v129
    %v131 = vshll.u32 %v122, %v129
    %v132 = vshrl.u32 %v114, %v130
    %v133 = vor.u32 %v131, %v132
    %v134 = vsub.s32 4294967266, %v129
    %v135 = vadd.s32 %v134, 127
    %v136 = vshll.u32 %v135, 23
    %v137 = vor.u32 4788187, %v136
    %v138 = vand.u32 2147483647, %v137
    %v140 = vcvt.s32.f32 %v133
    %v141 = vmul.f32 %v140, %v138
    %v142 = vxor.u32 %v141, 2147483648
    %v143 = vsel %vm22, %v142, %v141
    %v144 = vsub.s32 4, %v120
    %v145 = vsel %vm22, %v144, %v120
    %v146 = vsel %vm21, %v19, %v143
    %v147 = vsel %vm21, 0, %v145
    %v148 = vmul.f32 %v146, %v146
    %v149 = vmul.f32 %v148, -0.001358992
    %v150 = vadd.f32 %v149, 0.041655596
    %v151 = vmul.f32 %v148, %v150
    %v152 = vadd.f32 %v151, -0.4999988
    %v153 = vmul.f32 %v148, %v152
    %v154 = vadd.f32 1.0, %v153
    %v155 = vmul.f32 %v146, %v146
    %v156 = vmul.f32 %v155, -0.00019511016
    %v157 = vadd.f32 %v156, 0.008332121
    %v158 = vmul.f32 %v155, %v157
    %v159 = vadd.f32 %v158, -0.16666654
    %v160 = vmul.f32 %v155, %v159
    %v161 = vadd.f32 %v160, 1.0
    %v162 = vmul.f32 %v161, %v146
    %vm163 = vweird.f32 %v19
    %v164 = vand.u32 %v147, 3
    %vm165 = vcmp.lt.s32.totalorder %v164, 2
    %vm166 = vcmp.eq.s32.totalorder %v164, 0
    %v167 = vxor.u32 %v162, 2147483648
    %v168 = vsel %vm166, %v154, %v167
    %vm169 = vcmp.eq.s32.totalorder %v164, 2
    %v170 = vxor.u32 %v154, 2147483648
    %v171 = vsel %vm169, %v170, %v162
    %v172 = vsel %vm165, %v168, %v171
    %v173 = vsel %vm163, nan, %v172
    %v174 = vsub.f32 %v18, %v173
    %v175 = vmul.f32 %v17, %v17
    %v176 = vadd.f32 %v174, %v175
    %v177 = vmul.f32 %v17, 6.2831855
    %v178 = vand.u32 2147483647, %v177
    %vm179 = vcmp.le.f32.partialorder %v178, 0.7853982
    %vm180 = vcmp.lt.s32.totalorder %v177, 0
    %v181 = vand.u32 %v177, 2139095040
    %v182 = vshrl.u32 %v181, 23
    %v183 = vsub.s32 %v182, 127
    %v184 = vand.u32 2147483647, %v177
    %v185 = vand.u32 %v184, 8388607
    %v186 = vor.u32 %v185, 8388608
    %v187 = vsub.s32 0, %v186
    %v188 = vadd.s32 %v183, 1
    %vm189 = vcmp.gt.s32.totalorder %v188, 0
    %v190 = vsel %vm189, %v188, 0
    %v191 = vshrl.u32 %v190, 5
    %v192 = vand.u32 %v190, 31
    %v193 = vsub.s32 32, %v192
    %v194 = vshrl.u32 683565275, %v193
    %v195 = vshll.u32 683565275, %v192
    %v196 = vshrl.u32 2475754826, %v193
    %v197 = vor.u32 %v195, %v196
    %v198 = vshll.u32 2475754826, %v192
    %v199 = vshrl.u32 2131351028, %v193
    %v200 = vor.u32 %v198, %v199
    %v201 = vshll.u32 2131351028, %v192
    %v202 = vshrl.u32 2102212464, %v193
    %v203 = vor.u32 %v201, %v202
    %v204 = vshll.u32 2102212464, %v192
    %v205 = vshrl.u32 920167782, %v193
    %v206 = vor.u32 %v204, %v205
    %v207 = vshll.u32 920167782, %v192
    %v208 = vshrl.u32 1326507024, %v193
    %v209 = vor.u32 %v207, %v208
    %vm210 = vcmp.lt.s32.totalorder %v191, 1
    %vm211 = vcmp.lt.s32.totalorder %v191, 2
    %vm212 = vcmp.lt.s32.totalorder %v191, 3
    %vm213 = vcmp.lt.s32.totalorder %v191, 4
    %v214 = vsel %vm210, %v194, %v197
    %v215 = vsel %vm213, %v203, 2102212464
    %v216 = vsel %vm212, %v200, %v215
    %v217 = vsel %vm211, %v214, %v216
    %v218 = vsel %vm210, %v197, %v200
    %v219 = vsel %vm213, %v206, 920167782
    %v220 = vsel %vm212, %v203, %v219
    %v221 = vsel %vm211, %v218, %v220
    %v222 = vsel %vm210, %v200, %v203
    %v223 = vsel %vm213, %v209, 1326507024
    %v224 = vsel %vm212, %v206, %v223
    %v225 = vsel %vm211, %v222, %v224
    %v226 = vshll.u32 %v186, 8
    %v227 = vand.u32 %v226, 65535
    %v228 = vshrl.u32 %v226, 16
    %v229 = vand.u32 %v225, 65535
    %v230 = vshrl.u32 %v225, 16
    %v231 = vmul.u32 %v227, %v229
    %v232 = vmul.u32 %v227, %v230
    %v233 = vmul.u32 %v228, %v229
    %v234 = vmul.u32 %v228, %v230
    %v235 = vshll.u32 %v232, 16
    %v236 = vshrl.u32 %v232, 16
    %v237 = vshll.u32 %v233, 16
    %v238 = vshrl.u32 %v233, 16
    %vm239 = vc.u32 %v231, %v235
    %v240 = vsel %vm239, 1, 0
    %v241 = vadd.s32 %v231, %v235
    %v242 = vadd.s32 %v234, %v240
    %vm243 = vc.u32 %v241, %v237
    %v244 = vsel %vm243, 1, 0
    %v245 = vadd.s32 %v241, %v237
    %v246 = vadd.s32 %v242, %v244
    %v247 = vadd.s32 %v246, %v236
    %v248 = vadd.s32 %v247, %v238
    %v249 = vand.u32 %v226, 65535
    %v250 = vshrl.u32 %v226, 16
    %v251 = vand.u32 %v221, 65535
    %v252 = vshrl.u32 %v221, 16
    %v253 = vmul.u32 %v249, %v251
    %v254 = vmul.u32 %v249, %v252
    %v255 = vmul.u32 %v250, %v251
    %v256 = vmul.u32 %v250, %v252
    %v257 = vshll.u32 %v254, 16
    %v258 = vshrl.u32 %v254, 16
    %v259 = vshll.u32 %v255, 16
    %v260 = vshrl.u32 %v255, 16
    %vm261 = vc.u32 %v253, %v257
    %v262 = vsel %vm261, 1, 0
    %v263 = vadd.s32 %v253, %v257
    %v264 = vadd.s32 %v256, %v262
    %vm265 = vc.u32 %v263, %v259
    %v266 = vsel %vm265, 1, 0
    %v267 = vadd.s32 %v263, %v259
    %v268 = vadd.s32 %v264, %v266
    %v269 = vadd.s32 %v268, %v258
    %v270 = vadd.s32 %v269, %v260
    %v271 = vmul.u32 %v226, %v217
    %v272 = vadd.s32 %v248, %v267
    %vm273 = vc.u32 %v248, %v267
    %v274 = vadd.s32 %v270, 1
    %v275 = vsel %vm273, %v274, %v270
    %v276 = vadd.s32 %v271, %v275
    %v277 = vadd.s32 %v276, 536870912
    %v278 = vshrl.u32 %v277, 30
    %v279 = vshll.u32 %v278, 30
    %v280 = vsub.s32 %v276, %v279
    %vm281 = vcmp.lt.s32.totalorder %v280, 0
    %v282 = vsub.s32 0, %v280
    %v283 = vsel %vm281, %v282, %v280
    %v284 = vclz %v283
    %v285 = vsub.s32 %v284, 2
    %vm286 = vcmp.gt.s32.totalorder 0, %v285
    %v287 = vsel %vm286, 0, %v285
    %v288 = vsub.s32 32, %v287
    %v289 = vshll.u32 %v280, %v287
    %v290 = vshrl.u32 %v272, %v288
    %v291 = vor.u32 %v289, %v290
    %v292 = vsub.s32 4294967266, %v287
    %v293 = vadd.s32 %v292, 127
    %v294 = vshll.u32 %v293, 23
    %v295 = vor.u32 4788187, %v294
    %v296 = vand.u32 2147483647, %v295
    %v298 = vcvt.s32.f32 %v291
    %v299 = vmul.f32 %v298, %v296
    %v300 = vxor.u32 %v299, 2147483648
    %v301 = vsel %vm180, %v300, %v299
    %v302 = vsub.s32 4, %v278
    %v303 = vsel %vm180, %v302, %v278
    %v304 = vsel %vm179, %v177, %v301
    %v305 = vsel %vm179, 0, %v303
    %v306 = vmul.f32 %v304, %v304
    %v307 = vmul.f32 %v306, -0.001358992
    %v308 = vadd.f32 %v307, 0.041655596
    %v309 = vmul.f32 %v306, %v308
    %v310 = vadd.f32 %v309, -0.4999988
    %v311 = vmul.f32 %v306, %v310
    %v312 = vadd.f32 1.0, %v311
    %v313 = vmul.f32 %v304, %v304
    %v314 = vmul.f32 %v313, -0.00019511016
    %v315 = vadd.f32 %v314, 0.008332121
    %v316 = vmul.f32 %v313, %v315
    %v317 = vadd.f32 %v316, -0.16666654
    %v318 = vmul.f32 %v313, %v317
    %v319 = vadd.f32 %v318, 1.0
    %v320 = vmul.f32 %v319, %v304
    %vm321 = vweird.f32 %v177
    %v322 = vand.u32 %v305, 3
    %vm323 = vcmp.lt.s32.totalorder %v322, 2
    %vm324 = vcmp.eq.s32.totalorder %v322, 0
    %v325 = vxor.u32 %v320, 2147483648
    %v326 = vsel %vm324, %v312, %v325
    %vm327 = vcmp.eq.s32.totalorder %v322, 2
    %v328 = vxor.u32 %v312, 2147483648
    %v329 = vsel %vm327, %v328, %v320
    %v330 = vsel %vm323, %v326, %v329
    %v331 = vsel %vm321, nan, %v330
    %v332 = vsub.f32 %v176, %v331
    %v333 = vadd.f32 %v332, 2.0
    %vm334 = vcmask 0
    %335 = vst.msk [vmem:[#allocation4] sm:$0x1] %vm334, %v333
    // Predicated region
    $region10: #{rastrigin.1} parent=1 // pred_check
      _
    $region11: #{rastrigin.1} parent=1 // pred_check_branch
      %337 = sbr.rel (0) target = $region13
    $region12: #{rastrigin.1} parent=1 // pred_region
      %339 = vsyncadd [#allocation5], 0
      %s341 = sshll.u32 [#allocation4], 4
      %s342 = int_to_ptr.vmem [resolvable:$true] %s341
      %s343 = sshll.u32 %s2, 4
      %s344 = int_to_ptr.hbm [resolvable:$true] %s343
      %346 = dma.vmem_to_hbm [thread:$0]  %s342, 16, %s344, [#allocation5]
    $region13: #{rastrigin.1} parent=1 // pred_fallthru
      _
    // Predicated region
    $region14: #{rastrigin.1} parent=1 // pred_check
      _
    $region15: #{rastrigin.1} parent=1 // pred_check_branch
      %348 = sbr.rel (0) target = $region17
    $region16: #{rastrigin.1} parent=1 // pred_region
      %350 = dma.done [#allocation5], 16
    $region17: #{rastrigin.1} parent=1 // pred_fallthru
      _
    %351 = vsyncpa [#allocation5], 1

</llo_original>
